<compile_context>
chip_gen: v5e
topology: v5e:2x2
jax: 0.10.0
libtpu: 0.0.40
codegen_flags: <defaults>
</compile_context>

<pallas_src>
import functools

import jax
import jax.numpy as jnp
from jax.experimental import pallas as pl
from jax.experimental.pallas import tpu as pltpu


def _round_up(n, m):
    return ((n + m - 1) // m) * m


def _pick_batches_per_tile(n, l, target_lanes=512):
    """Fold whole batch segments into one lane tile (lane-dense out blocks).

    Tile width must be a multiple of 128 or cover the whole fused N*L axis
    (Pallas (8,128) block rule). Prefers ~target_lanes-wide tiles; falls back to a
    single tile over everything when nothing divides cleanly.
    """
    if n * l <= target_lanes:
        return n
    best = n
    for b in range(1, n + 1):
        if n % b == 0 and (b * l) % 128 == 0:
            best = b
            if b * l >= target_lanes:
                break
    return best


def temporal_block_kernel(x_ref, w1_ref, b1_ref, w2_ref, b2_ref, o_ref, *,
                          L, k, d, left, right, bpt, c_out, c_out_p, k1p, k2p):
    """conv1(+fused residual) -> relu -> conv2 -> relu -> +res -> relu on one lane tile.

    x_ref : (C_in, bpt*L)      f32   bpt whole batch segments, fused along lanes
    w1_ref: (2*C_out_p, k1p)   bf16  rows [0,C_out): conv1 taps (col = t*C_in + c)
                                     rows [C_out_p, C_out_p+C_out): 1x1 Wd embedded in
                                     the centre-tap columns (residual fused into conv1)
    b1_ref: (2*C_out_p, 1)     f32   [b1 ; bd], zero in padded rows
    w2_ref: (C_out_p, k2p)     bf16  conv2 taps (col = t*C_out_p + c)
    b2_ref: (C_out_p, 1)       f32
    o_ref : (C_out, bpt*L)     f32
    """
    tw = bpt * L
    x = x_ref[...]                                           # (C_in, tw) f32

    def cat(parts, axis):
        return parts[0] if len(parts) == 1 else jnp.concatenate(parts, axis=axis)

    def im2col(v, kp):
        """(C, tw) f32 -> (kp, tw) bf16: per-batch-segment 'same' padding, k dilated
        taps stacked along the contraction dim, zero rows up to the padded kp."""
        # TODO(synk): if the v5e vst slot saturates, build the shifted taps with
        # pltpu.roll (XLU slot) instead of concat-of-lane-slices.
        c = v.shape[0]
        padded = []
        for i in range(bpt):
            seg = v[:, i * L:(i + 1) * L]
            pieces = []
            if left:
                pieces.append(jnp.zeros((c, left), v.dtype))
            pieces.append(seg)
            if right:
                pieces.append(jnp.zeros((c, right), v.dtype))
            padded.append(cat(pieces, 1))                    # (c, L + left + right)
        taps = [cat([p[:, t * d:t * d + L] for p in padded], 1) for t in range(k)]
        if kp > k * c:
            taps.append(jnp.zeros((kp - k * c, tw), v.dtype))
        return cat(taps, 0).astype(jnp.bfloat16)             # (kp, tw)

    # ---- conv1 + 1x1 downsample residual: ONE MXU matmul (bf16 in, f32 acc) ----
    pre = jnp.dot(w1_ref[...], im2col(x, k1p),
                  preferred_element_type=jnp.float32) + b1_ref[...]
    h = jnp.maximum(pre[:c_out_p], 0.0)                      # conv1 -> relu (dropout=id)
    res = pre[c_out_p:]                                      # residual path (no relu)

    # ---- conv2 (+bias) -> relu ----
    out = jnp.dot(w2_ref[...], im2col(h, k2p),
                  preferred_element_type=jnp.float32) + b2_ref[...]
    out = jnp.maximum(out, 0.0)

    # ---- residual add + final relu ----
    y = jnp.maximum(out + res, 0.0)
    if c_out == c_out_p:
        o_ref[...] = y
    else:
        o_ref[...] = y[:c_out, :]


def temporal_block_forward(x, params, *, kernel_size, dilation, c_out,
                           vmem_limit_bytes=None):
    """x: (N, C_in, L) float32 -> (N, C_out, L) float32."""
    n, c_in, seq_len = x.shape
    k, d = kernel_size, dilation
    total = d * (k - 1)
    left = total // 2                                  # matches PyTorch padding='same'
    right = total - left

    m1, k1p = params["w1aug"].shape
    c_out_p, k2p = params["w2p"].shape

    bpt = _pick_batches_per_tile(n, seq_len)
    tw = bpt * seq_len
    num_tiles = n // bpt

    # Lane-dense fused layout (layout plumbing outside the kernel): (C_in, N*L).
    xf = jnp.transpose(x, (1, 0, 2)).reshape(c_in, n * seq_len)

    kernel = functools.partial(
        temporal_block_kernel, L=seq_len, k=k, d=d, left=left, right=right,
        bpt=bpt, c_out=c_out, c_out_p=c_out_p, k1p=k1p, k2p=k2p)

    flops = 2 * (m1 * k1p + c_out_p * k2p) * n * seq_len
    param_bytes = sum(int(v.size) * v.dtype.itemsize
                      for v in (params["w1aug"], params["b1aug"],
                                params["w2p"], params["b2p"]))
    bytes_accessed = 4 * n * seq_len * (c_in + c_out) + param_bytes

    # TODO(synk): for very long sequences add an L-tile grid axis with a conv halo and
    # size tiles for v7x's 64 MiB VMEM (set vmem_limit_bytes accordingly); whole-L tiles
    # per batch group are fine at these shapes.
    # TODO(synk): resident weight specs could use pipeline_mode=pl.Buffered(1) to halve
    # their VMEM footprint for large C_out under v7x's cap (default buffering kept here).
    # TODO(synk): for HBM-bound v5e/v6e deployments, accept/emit bf16 activations to
    # halve I/O bytes (f32 I/O kept to match the PyTorch module's dtype).
    yf = pl.pallas_call(
        kernel,
        out_shape=jax.ShapeDtypeStruct((c_out, n * seq_len), jnp.float32),
        grid_spec=pltpu.PrefetchScalarGridSpec(
            num_scalar_prefetch=0,
            grid=(num_tiles,),
            in_specs=[
                pl.BlockSpec((c_in, tw), lambda j: (0, j)),       # x lane tile
                pl.BlockSpec((m1, k1p), lambda j: (0, 0)),        # [W1 ; Wd] (resident)
                pl.BlockSpec((m1, 1), lambda j: (0, 0)),          # [b1 ; bd]
                pl.BlockSpec((c_out_p, k2p), lambda j: (0, 0)),   # W2 (resident)
                pl.BlockSpec((c_out_p, 1), lambda j: (0, 0)),     # b2
            ],
            out_specs=pl.BlockSpec((c_out, tw), lambda j: (0, j)),
        ),
        compiler_params=pltpu.CompilerParams(
            dimension_semantics=("parallel",),
            vmem_limit_bytes=vmem_limit_bytes),
        cost_estimate=pl.CostEstimate(flops=flops, transcendentals=0,
                                      bytes_accessed=bytes_accessed),
    )(xf, params["w1aug"], params["b1aug"], params["w2p"], params["b2p"])

    return jnp.transpose(yf.reshape(c_out, n, seq_len), (1, 0, 2))


def init_logical_params(key, c_in, c_out, k):
    """Synthetic parameters with the module's shapes; weight_norm (dim=0) folded.

    With an H=1 input and padding='same', only Conv2d kernel row (k-1)//2 touches real
    data, so that row is extracted as the effective 1-D kernel.
    """
    # TODO(synk): row extraction assumes odd kernel_size (two rows act for even k).
    ks = jax.random.split(key, 8)
    r0 = (k - 1) // 2

    def wn_conv_taps(kv, kg, ci, co):
        v = 0.01 * jax.random.normal(kv, (co, ci, k, k), jnp.float32)
        g = 1.0 + 0.1 * jax.random.normal(kg, (co, 1, 1, 1), jnp.float32)
        w = g * v / jnp.sqrt(jnp.sum(v * v, axis=(1, 2, 3), keepdims=True))
        return w[:, :, r0, :].astype(jnp.bfloat16)            # (co, ci, k) 1-D taps

    return {
        "w1": wn_conv_taps(ks[0], ks[1], c_in, c_out),
        "b1": 0.1 * jax.random.normal(ks[4], (c_out, 1), jnp.float32),
        "w2": wn_conv_taps(ks[2], ks[3], c_out, c_out),
        "b2": 0.1 * jax.random.normal(ks[5], (c_out, 1), jnp.float32),
        "wd": (0.01 * jax.random.normal(ks[6], (c_out, c_in), jnp.float32)
               ).astype(jnp.bfloat16),
        "bd": 0.1 * jax.random.normal(ks[7], (c_out, 1), jnp.float32),
    }


def pack_params(lp, *, c_in, c_out, k, d):
    """Fuse/pad the logical params into the kernel layout.

    * Residual fusion: Wd is written into the centre-tap columns of an augmented conv1
      weight whose rows [C_out_p, C_out_p+C_out) produce the 1x1 downsample output.
    * MXU alignment: output rows padded to a multiple of 8; contraction dims (k*C_in,
      k*C_out_p) zero-padded to a multiple of 16 (bf16 sublane pack).
    """
    total = d * (k - 1)
    left = total // 2
    assert left % d == 0, "even kernel_size unsupported (no integer centre tap)"
    t_c = left // d                                           # tap with zero time shift

    c_out_p = _round_up(c_out, 8)
    m1 = 2 * c_out_p
    k1p = _round_up(k * c_in, 16)
    k2p = _round_up(k * c_out_p, 16)

    w1_flat = jnp.transpose(lp["w1"], (0, 2, 1)).reshape(c_out, k * c_in)  # col=t*ci+c
    w1aug = jnp.zeros((m1, k1p), jnp.float32)
    w1aug = w1aug.at[:c_out, :k * c_in].set(w1_flat.astype(jnp.float32))
    w1aug = w1aug.at[c_out_p:c_out_p + c_out,
                     t_c * c_in:(t_c + 1) * c_in].set(lp["wd"].astype(jnp.float32))

    b1aug = jnp.zeros((m1, 1), jnp.float32)
    b1aug = b1aug.at[:c_out].set(lp["b1"])
    b1aug = b1aug.at[c_out_p:c_out_p + c_out].set(lp["bd"])

    w2p = jnp.zeros((c_out_p, k2p), jnp.float32)
    for t in range(k):
        w2p = w2p.at[:c_out, t * c_out_p:t * c_out_p + c_out].set(
            lp["w2"][:, :, t].astype(jnp.float32))

    b2p = jnp.zeros((c_out_p, 1), jnp.float32).at[:c_out].set(lp["b2"])

    return {"w1aug": w1aug.astype(jnp.bfloat16), "b1aug": b1aug,
            "w2p": w2p.astype(jnp.bfloat16), "b2p": b2p}


def reference_forward(x, lp, *, kernel_size, dilation):
    """Pure-JAX reference of the same math (same bf16 rounding points), for sanity."""
    n, c_in, seq_len = x.shape
    k, d = kernel_size, dilation
    total = d * (k - 1)
    left = total // 2
    right = total - left

    def conv_same(v_bf, w_taps, b):
        vp = jnp.pad(v_bf, ((0, 0), (0, 0), (left, right)))
        acc = jnp.zeros((n, w_taps.shape[0], seq_len), jnp.float32)
        for t in range(k):
            acc = acc + jnp.einsum(
                "oc,ncl->nol", w_taps[:, :, t].astype(jnp.float32),
                vp[:, :, t * d:t * d + seq_len].astype(jnp.float32))
        return acc + b

    x_bf = x.astype(jnp.bfloat16)
    h = jax.nn.relu(conv_same(x_bf, lp["w1"], lp["b1"]))
    o = jax.nn.relu(conv_same(h.astype(jnp.bfloat16), lp["w2"], lp["b2"]))
    res = jnp.einsum("oc,ncl->nol", lp["wd"].astype(jnp.float32),
                     x_bf.astype(jnp.float32)) + lp["bd"]
    return jax.nn.relu(o + res)


if __name__ == "__main__":
    # Module config: n_inputs=8, n_outputs=16, kernel_size=3, stride=1, dilation=1,
    # padding=0 (ZeroPad2d arg), dropout inactive at inference.
    N, C_IN, C_OUT, L = 2, 8, 16, 16
    K, DIL = 3, 1

    key = jax.random.PRNGKey(0)
    key_x, key_p = jax.random.split(key)
    x = jax.random.normal(key_x, (N, C_IN, L), jnp.float32)

    logical = init_logical_params(key_p, C_IN, C_OUT, K)
    packed = pack_params(logical, c_in=C_IN, c_out=C_OUT, k=K, d=DIL)

    y = temporal_block_forward(x, packed, kernel_size=K, dilation=DIL, c_out=C_OUT)
    y = jax.block_until_ready(y)

    y_ref = reference_forward(x, logical, kernel_size=K, dilation=DIL)
    assert y.shape == (N, C_OUT, L)
    assert jnp.allclose(y, y_ref, rtol=1e-2, atol=1e-2), \
        "Pallas kernel mismatch vs JAX reference"

    print("KERNEL_OK")
</pallas_src>

<mosaic_0001>
module attributes {stable_mosaic.version = 11 : i64} {
  func.func @temporal_block_kernel(%arg0: i32, %arg1: memref<8x32xf32, #tpu.memory_space<vmem>>, %arg2: memref<32x32xbf16, #tpu.memory_space<vmem>>, %arg3: memref<32x1xf32, #tpu.memory_space<vmem>>, %arg4: memref<16x48xbf16, #tpu.memory_space<vmem>>, %arg5: memref<16x1xf32, #tpu.memory_space<vmem>>, %arg6: memref<16x32xf32, #tpu.memory_space<vmem>>) attributes {dimension_semantics = [#tpu.dimension_semantics<parallel>], iteration_bounds = array<i64: 1>, scalar_prefetch = 0 : i64, scratch_operands = 0 : i64, tpu.core_type = #tpu.core_type<tc>, window_params = [{transform_indices = @transform_0, window_bounds = array<i64: 8, 32>}, {pipeline_mode = #tpu.pipeline_mode<synchronous>, transform_indices = @transform_1, window_bounds = array<i64: 32, 32>}, {pipeline_mode = #tpu.pipeline_mode<synchronous>, transform_indices = @transform_2, window_bounds = array<i64: 32, 1>}, {pipeline_mode = #tpu.pipeline_mode<synchronous>, transform_indices = @transform_3, window_bounds = array<i64: 16, 48>}, {pipeline_mode = #tpu.pipeline_mode<synchronous>, transform_indices = @transform_4, window_bounds = array<i64: 16, 1>}, {transform_indices = @transform_5, window_bounds = array<i64: 16, 32>}]} {
    %c0 = arith.constant 0 : index
    %c0_0 = arith.constant 0 : index
    %0 = vector.load %arg1[%c0, %c0_0] : memref<8x32xf32, #tpu.memory_space<vmem>>, vector<8x32xf32>
    %c0_1 = arith.constant 0 : index
    %c0_2 = arith.constant 0 : index
    %1 = vector.load %arg2[%c0_1, %c0_2] : memref<32x32xbf16, #tpu.memory_space<vmem>>, vector<32x32xbf16>
    %2 = vector.extract_strided_slice %0 {offsets = [0, 0], sizes = [8, 16], strides = [1, 1]} : vector<8x32xf32> to vector<8x16xf32>
    %cst = arith.constant 0.000000e+00 : f32
    %3 = vector.broadcast %cst : f32 to vector<8x1xf32>
    %cst_3 = arith.constant 0.000000e+00 : f32
    %4 = vector.broadcast %cst_3 : f32 to vector<8x1xf32>
    %5 = tpu.concatenate %3, %2, %4 in 1 : vector<8x1xf32>, vector<8x16xf32>, vector<8x1xf32> -> vector<8x18xf32>
    %6 = vector.extract_strided_slice %0 {offsets = [0, 16], sizes = [8, 16], strides = [1, 1]} : vector<8x32xf32> to vector<8x16xf32>
    %cst_4 = arith.constant 0.000000e+00 : f32
    %7 = vector.broadcast %cst_4 : f32 to vector<8x1xf32>
    %cst_5 = arith.constant 0.000000e+00 : f32
    %8 = vector.broadcast %cst_5 : f32 to vector<8x1xf32>
    %9 = tpu.concatenate %7, %6, %8 in 1 : vector<8x1xf32>, vector<8x16xf32>, vector<8x1xf32> -> vector<8x18xf32>
    %10 = vector.extract_strided_slice %5 {offsets = [0, 0], sizes = [8, 16], strides = [1, 1]} : vector<8x18xf32> to vector<8x16xf32>
    %11 = vector.extract_strided_slice %9 {offsets = [0, 0], sizes = [8, 16], strides = [1, 1]} : vector<8x18xf32> to vector<8x16xf32>
    %12 = tpu.concatenate %10, %11 in 1 : vector<8x16xf32>, vector<8x16xf32> -> vector<8x32xf32>
    %13 = vector.extract_strided_slice %5 {offsets = [0, 1], sizes = [8, 16], strides = [1, 1]} : vector<8x18xf32> to vector<8x16xf32>
    %14 = vector.extract_strided_slice %9 {offsets = [0, 1], sizes = [8, 16], strides = [1, 1]} : vector<8x18xf32> to vector<8x16xf32>
    %15 = tpu.concatenate %13, %14 in 1 : vector<8x16xf32>, vector<8x16xf32> -> vector<8x32xf32>
    %16 = vector.extract_strided_slice %5 {offsets = [0, 2], sizes = [8, 16], strides = [1, 1]} : vector<8x18xf32> to vector<8x16xf32>
    %17 = vector.extract_strided_slice %9 {offsets = [0, 2], sizes = [8, 16], strides = [1, 1]} : vector<8x18xf32> to vector<8x16xf32>
    %18 = tpu.concatenate %16, %17 in 1 : vector<8x16xf32>, vector<8x16xf32> -> vector<8x32xf32>
    %cst_6 = arith.constant 0.000000e+00 : f32
    %19 = vector.broadcast %cst_6 : f32 to vector<8x32xf32>
    %20 = tpu.concatenate %12, %15, %18, %19 in 0 : vector<8x32xf32>, vector<8x32xf32>, vector<8x32xf32>, vector<8x32xf32> -> vector<32x32xf32>
    %21 = arith.truncf %20 : vector<32x32xf32> to vector<32x32xbf16>
    %cst_7 = arith.constant dense<0.000000e+00> : vector<32x32xf32>
    %22 = tpu.matmul %1, %21, %cst_7 {dimension_numbers = #tpu.dot_dimension_numbers<[1], [0], [0], [1], [0, 0, 1, 1], [], []>} : vector<32x32xbf16>, vector<32x32xbf16>, vector<32x32xf32> -> vector<32x32xf32>
    %c0_8 = arith.constant 0 : index
    %c0_9 = arith.constant 0 : index
    %23 = vector.load %arg3[%c0_8, %c0_9] : memref<32x1xf32, #tpu.memory_space<vmem>>, vector<32x1xf32>
    %24 = vector.broadcast %23 : vector<32x1xf32> to vector<32x32xf32>
    %25 = arith.addf %22, %24 : vector<32x32xf32>
    %26 = vector.extract_strided_slice %25 {offsets = [0, 0], sizes = [16, 32], strides = [1, 1]} : vector<32x32xf32> to vector<16x32xf32>
    %cst_10 = arith.constant 0.000000e+00 : f32
    %27 = vector.broadcast %cst_10 : f32 to vector<16x32xf32>
    %28 = arith.maximumf %26, %27 : vector<16x32xf32>
    %29 = vector.extract_strided_slice %25 {offsets = [16, 0], sizes = [16, 32], strides = [1, 1]} : vector<32x32xf32> to vector<16x32xf32>
    %c0_11 = arith.constant 0 : index
    %c0_12 = arith.constant 0 : index
    %30 = vector.load %arg4[%c0_11, %c0_12] : memref<16x48xbf16, #tpu.memory_space<vmem>>, vector<16x48xbf16>
    %31 = vector.extract_strided_slice %28 {offsets = [0, 0], sizes = [16, 16], strides = [1, 1]} : vector<16x32xf32> to vector<16x16xf32>
    %cst_13 = arith.constant 0.000000e+00 : f32
    %32 = vector.broadcast %cst_13 : f32 to vector<16x1xf32>
    %cst_14 = arith.constant 0.000000e+00 : f32
    %33 = vector.broadcast %cst_14 : f32 to vector<16x1xf32>
    %34 = tpu.concatenate %32, %31, %33 in 1 : vector<16x1xf32>, vector<16x16xf32>, vector<16x1xf32> -> vector<16x18xf32>
    %35 = vector.extract_strided_slice %28 {offsets = [0, 16], sizes = [16, 16], strides = [1, 1]} : vector<16x32xf32> to vector<16x16xf32>
    %cst_15 = arith.constant 0.000000e+00 : f32
    %36 = vector.broadcast %cst_15 : f32 to vector<16x1xf32>
    %cst_16 = arith.constant 0.000000e+00 : f32
    %37 = vector.broadcast %cst_16 : f32 to vector<16x1xf32>
    %38 = tpu.concatenate %36, %35, %37 in 1 : vector<16x1xf32>, vector<16x16xf32>, vector<16x1xf32> -> vector<16x18xf32>
    %39 = vector.extract_strided_slice %34 {offsets = [0, 0], sizes = [16, 16], strides = [1, 1]} : vector<16x18xf32> to vector<16x16xf32>
    %40 = vector.extract_strided_slice %38 {offsets = [0, 0], sizes = [16, 16], strides = [1, 1]} : vector<16x18xf32> to vector<16x16xf32>
    %41 = tpu.concatenate %39, %40 in 1 : vector<16x16xf32>, vector<16x16xf32> -> vector<16x32xf32>
    %42 = vector.extract_strided_slice %34 {offsets = [0, 1], sizes = [16, 16], strides = [1, 1]} : vector<16x18xf32> to vector<16x16xf32>
    %43 = vector.extract_strided_slice %38 {offsets = [0, 1], sizes = [16, 16], strides = [1, 1]} : vector<16x18xf32> to vector<16x16xf32>
    %44 = tpu.concatenate %42, %43 in 1 : vector<16x16xf32>, vector<16x16xf32> -> vector<16x32xf32>
    %45 = vector.extract_strided_slice %34 {offsets = [0, 2], sizes = [16, 16], strides = [1, 1]} : vector<16x18xf32> to vector<16x16xf32>
    %46 = vector.extract_strided_slice %38 {offsets = [0, 2], sizes = [16, 16], strides = [1, 1]} : vector<16x18xf32> to vector<16x16xf32>
    %47 = tpu.concatenate %45, %46 in 1 : vector<16x16xf32>, vector<16x16xf32> -> vector<16x32xf32>
    %48 = tpu.concatenate %41, %44, %47 in 0 : vector<16x32xf32>, vector<16x32xf32>, vector<16x32xf32> -> vector<48x32xf32>
    %49 = arith.truncf %48 : vector<48x32xf32> to vector<48x32xbf16>
    %cst_17 = arith.constant dense<0.000000e+00> : vector<16x32xf32>
    %50 = tpu.matmul %30, %49, %cst_17 {dimension_numbers = #tpu.dot_dimension_numbers<[1], [0], [0], [1], [0, 0, 1, 1], [], []>} : vector<16x48xbf16>, vector<48x32xbf16>, vector<16x32xf32> -> vector<16x32xf32>
    %c0_18 = arith.constant 0 : index
    %c0_19 = arith.constant 0 : index
    %51 = vector.load %arg5[%c0_18, %c0_19] : memref<16x1xf32, #tpu.memory_space<vmem>>, vector<16x1xf32>
    %52 = vector.broadcast %51 : vector<16x1xf32> to vector<16x32xf32>
    %53 = arith.addf %50, %52 : vector<16x32xf32>
    %cst_20 = arith.constant 0.000000e+00 : f32
    %54 = vector.broadcast %cst_20 : f32 to vector<16x32xf32>
    %55 = arith.maximumf %53, %54 : vector<16x32xf32>
    %56 = arith.addf %55, %29 : vector<16x32xf32>
    %cst_21 = arith.constant 0.000000e+00 : f32
    %57 = vector.broadcast %cst_21 : f32 to vector<16x32xf32>
    %58 = arith.maximumf %56, %57 : vector<16x32xf32>
    %c0_22 = arith.constant 0 : index
    %c0_23 = arith.constant 0 : index
    %59 = vector.load %arg6[%c0_22, %c0_23] : memref<16x32xf32, #tpu.memory_space<vmem>>, vector<16x32xf32>
    tpu.vector_store %arg6[%c0_22, %c0_23], %58 {strides = array<i32>} : memref<16x32xf32, #tpu.memory_space<vmem>>, vector<16x32xf32>,
    return
  }
  func.func @transform_0(%arg0: i32) -> (i32, i32) {
    %c0_i32 = arith.constant 0 : i32
    %c0_i32_0 = arith.constant 0 : i32
    return %c0_i32, %arg0 : i32, i32
  }
  func.func @transform_1(%arg0: i32) -> (i32, i32) {
    %c0_i32 = arith.constant 0 : i32
    %c0_i32_0 = arith.constant 0 : i32
    %c0_i32_1 = arith.constant 0 : i32
    return %c0_i32, %c0_i32_0 : i32, i32
  }
  func.func @transform_2(%arg0: i32) -> (i32, i32) {
    %c0_i32 = arith.constant 0 : i32
    %c0_i32_0 = arith.constant 0 : i32
    %c0_i32_1 = arith.constant 0 : i32
    return %c0_i32, %c0_i32_0 : i32, i32
  }
  func.func @transform_3(%arg0: i32) -> (i32, i32) {
    %c0_i32 = arith.constant 0 : i32
    %c0_i32_0 = arith.constant 0 : i32
    %c0_i32_1 = arith.constant 0 : i32
    return %c0_i32, %c0_i32_0 : i32, i32
  }
  func.func @transform_4(%arg0: i32) -> (i32, i32) {
    %c0_i32 = arith.constant 0 : i32
    %c0_i32_0 = arith.constant 0 : i32
    %c0_i32_1 = arith.constant 0 : i32
    return %c0_i32, %c0_i32_0 : i32, i32
  }
  func.func @transform_5(%arg0: i32) -> (i32, i32) {
    %c0_i32 = arith.constant 0 : i32
    %c0_i32_0 = arith.constant 0 : i32
    return %c0_i32, %arg0 : i32, i32
  }
}

</mosaic_0001>

<llo_original>
// kernel: tpu_custom_call.1
$region0: #{tpu_custom_call.1}
  #allocation0 [shape = 'u32[]', space=smem, size = 0x4, offset = 0x4, fixed_abs, tag = 'smem constant byte address 0x4 - core index']
  #allocation1 [shape = 'u32[72,128]{1,0:T(1,128)}', space=vmem, size = 0x9000, scoped, tag = 'internal scratch']
  %s0 = inlined_call_operand.vmem [shape: f32[8,32], index: 0, kind: input, shape index: {}]
  %s1 = inlined_call_operand.vmem [shape: bf16[32,32], index: 1, kind: input, shape index: {}]
  %s2 = inlined_call_operand.vmem [shape: f32[32,1], index: 2, kind: input, shape index: {}]
  %s3 = inlined_call_operand.vmem [shape: bf16[16,48], index: 3, kind: input, shape index: {}]
  %s4 = inlined_call_operand.vmem [shape: f32[16,1], index: 4, kind: input, shape index: {}]
  %s5 = inlined_call_operand.hbm [shape: f32[16,32], index: 5, kind: output, shape index: {}]
  %s6 = sld [smem:[#allocation0]]
  $region30: #{tpu_custom_call.1} parent=0
    _
  %s8 = ssub.s32 1, %s6
  %s9 = scalar_select 0, %s8, %s6
  $region1: #{tpu_custom_call.1} parent=0
    #allocation2 [shape = 'u8[8192]{0}', space=vmem, size = 0x2000, scoped, tag = 'output window, operand 0, single buffered']
    #allocation3 [shape = 's32[1]{0}', space=sflag, size = 0x4, scoped, tag = 'scoped memory for tpu_custom_call.1']
    %10 = vsyncpa [#allocation3], 0
    // Predicated region
    $region2: #{tpu_custom_call.1} parent=1 // pred_check
      _
    $region3: #{tpu_custom_call.1} parent=1 // pred_check_branch
      %12 = sbr.rel (0) target = $region5
    $region4: #{tpu_custom_call.1} parent=1 // pred_region
      _
    $region5: #{tpu_custom_call.1} parent=1 // pred_fallthru
      _
    // Predicated region
    $region6: #{tpu_custom_call.1} parent=1 // pred_check
      _
    $region7: #{tpu_custom_call.1} parent=1 // pred_check_branch
      %14 = sbr.rel (0) target = $region9
    $region8: #{tpu_custom_call.1} parent=1 // pred_region
      _
    $region9: #{tpu_custom_call.1} parent=1 // pred_fallthru
      _
    // Predicated region
    $region10: #{tpu_custom_call.1} parent=1 // pred_check
      _
    $region11: #{tpu_custom_call.1} parent=1 // pred_check_branch
      %16 = sbr.rel (0) target = $region13
    $region12: #{tpu_custom_call.1} parent=1 // pred_region
      _
    $region13: #{tpu_custom_call.1} parent=1 // pred_fallthru
      _
    // Predicated region
    $region14: #{tpu_custom_call.1} parent=1 // pred_check
      _
    $region15: #{tpu_custom_call.1} parent=1 // pred_check_branch
      %18 = sbr.rel (0) target = $region17
    $region16: #{tpu_custom_call.1} parent=1 // pred_region
      _
    $region17: #{tpu_custom_call.1} parent=1 // pred_fallthru
      _
    // Predicated region
    $region18: #{tpu_custom_call.1} parent=1 // pred_check
      _
    $region19: #{tpu_custom_call.1} parent=1 // pred_check_branch
      %20 = sbr.rel (0) target = $region21
    $region20: #{tpu_custom_call.1} parent=1 // pred_region
      _
    $region21: #{tpu_custom_call.1} parent=1 // pred_fallthru
      _
    %v22 = vld [vmem:[%s0] sm:$0xff]
    %v23 = vld [vmem:[%s1] sm:$0xf]
    %v24 = vld [vmem:[%s1 + $0x4] sm:$0xf]
    %v25 = vld [vmem:[%s1 + $0x8] sm:$0xf]
    %v26 = vld [vmem:[%s1 + $0xc] sm:$0xf]
    %28 = vrot.lane.b32.xlu0 %v22, 1
    %v29 = vpop.permute.xlu0 %28
    %vm31 = vcmask 7168
    %v32 = vsel %vm31, 0.0, %v29
    %vm33 = vcmask 138240
    %v34 = vsel %vm33, %v32, 0.0
    %35 = vrot.lane.b32.xlu0 %v22, 113
    %v36 = vpop.permute.xlu0 %35
    %v38 = vsel %vm31, 0.0, %v36
    %v39 = vsel %vm33, %v38, 0.0
    %41 = vrot.lane.b32.xlu0 %v39, 16
    %v42 = vpop.permute.xlu0 %41
    %vm44 = vcmask 130048
    %v45 = vsel %vm44, %v34, %v42
    %47 = vrot.lane.b32.xlu0 %v34, 127
    %v48 = vpop.permute.xlu0 %47
    %50 = vrot.lane.b32.xlu0 %v39, 15
    %v51 = vpop.permute.xlu0 %50
    %v53 = vsel %vm44, %v48, %v51
    %54 = vrot.lane.b32.xlu0 %v34, 126
    %v55 = vpop.permute.xlu0 %54
    %57 = vrot.lane.b32.xlu0 %v39, 14
    %v58 = vpop.permute.xlu0 %57
    %v60 = vsel %vm44, %v55, %v58
    %v61 = vpack.c.bf16 %v53, %v45
    %v62 = vpack.c.bf16 0.0, %v60
    %v63 = vld [vmem:[%s2] sm:$0xff]
    %v64 = vld [vmem:[%s2 + $0x8] sm:$0xff]
    %v65 = vld [vmem:[%s2 + $0x10] sm:$0xff]
    %v66 = vld [vmem:[%s2 + $0x18] sm:$0xff]
    %68 = vset.pattern.permute.xlu0 0
    %69 = vperm.xlu0 %68, %v63
    %v70 = vpop.permute.xlu0 %69
    %73 = vset.pattern.permute.xlu0 0
    %74 = vperm.xlu0 %73, %v64
    %v75 = vpop.permute.xlu0 %74
    %78 = vset.pattern.permute.xlu0 0
    %79 = vperm.xlu0 %78, %v65
    %v80 = vpop.permute.xlu0 %79
    %83 = vset.pattern.permute.xlu0 0
    %84 = vperm.xlu0 %83, %v66
    %v85 = vpop.permute.xlu0 %84
    %v91 = vunpack.c.l.b16 %v23
    %v92 = vunpack.c.l.b16 %v24
    %v93 = vunpack.c.l.b16 %v25
    %v94 = vunpack.c.l.b16 %v26
    %v95 = vpack.c.b16 %v92, %v91
    %v96 = vpack.c.b16 %v94, %v93
    %vm97 = vcmask 261120
    %v99 = vsel %vm97, %v95, 0
    %v102 = vsel %vm97, %v96, 0
    %104 = vmatpush.bf16.msra.mxu0 0
    %105 = vmatpush.bf16.msra.mxu0 0
    %106 = vmatpush.bf16.msra.mxu0 0
    %107 = vmatpush.bf16.msra.mxu0 0
    %108 = vmatpush.bf16.msra.mxu0 0
    %109 = vmatpush.bf16.msra.mxu0 0
    %110 = vmatpush.bf16.msra.mxu0 %v62
    %111 = vmatpush.bf16.msra.mxu0 %v61
    %112 = vmatmul.bf16.gmra.mxu0 %v99
    %v113 = vpop.f32.mrf.mxu0
    %v114 = vadd.f32 %v70, %v113
    %v115 = vpop.f32.mrf.mxu0
    %v116 = vadd.f32 %v75, %v115
    %117 = vmatmul.bf16.gmra.mxu0 %v102
    %v118 = vpop.f32.mrf.mxu0
    %v119 = vadd.f32 %v80, %v118
    %v120 = vpop.f32.mrf.mxu0
    %v121 = vadd.f32 %v85, %v120
    %122 = vdwg.mxu0
    %v123 = vmax.f32 %v114, 0.0
    %v124 = vmax.f32 %v116, 0.0
    %v125 = vld [vmem:[%s3] sm:$0xf]
    %v126 = vld [vmem:[%s3 + $0x4] sm:$0xf]
    %129 = vrot.lane.b32.xlu0 %v123, 1
    %v130 = vpop.permute.xlu0 %129
    %131 = vrot.lane.b32.xlu0 %v124, 1
    %v132 = vpop.permute.xlu0 %131
    %v135 = vsel %vm31, 0.0, %v130
    %v136 = vsel %vm31, 0.0, %v132
    %v137 = vsel %vm33, %v135, 0.0
    %v138 = vsel %vm33, %v136, 0.0
    %139 = vrot.lane.b32.xlu0 %v123, 113
    %v140 = vpop.permute.xlu0 %139
    %141 = vrot.lane.b32.xlu0 %v124, 113
    %v142 = vpop.permute.xlu0 %141
    %v145 = vsel %vm31, 0.0, %v140
    %v146 = vsel %vm31, 0.0, %v142
    %v147 = vsel %vm33, %v145, 0.0
    %v148 = vsel %vm33, %v146, 0.0
    %151 = vrot.lane.b32.xlu0 %v147, 16
    %v152 = vpop.permute.xlu0 %151
    %153 = vrot.lane.b32.xlu0 %v148, 16
    %v154 = vpop.permute.xlu0 %153
    %v157 = vsel %vm44, %v137, %v152
    %v158 = vsel %vm44, %v138, %v154
    %161 = vrot.lane.b32.xlu0 %v137, 127
    %v162 = vpop.permute.xlu0 %161
    %163 = vrot.lane.b32.xlu0 %v138, 127
    %v164 = vpop.permute.xlu0 %163
    %167 = vrot.lane.b32.xlu0 %v147, 15
    %v168 = vpop.permute.xlu0 %167
    %169 = vrot.lane.b32.xlu0 %v148, 15
    %v170 = vpop.permute.xlu0 %169
    %v173 = vsel %vm44, %v162, %v168
    %v174 = vsel %vm44, %v164, %v170
    %175 = vrot.lane.b32.xlu0 %v137, 126
    %v176 = vpop.permute.xlu0 %175
    %177 = vrot.lane.b32.xlu0 %v138, 126
    %v178 = vpop.permute.xlu0 %177
    %181 = vrot.lane.b32.xlu0 %v147, 14
    %v182 = vpop.permute.xlu0 %181
    %183 = vrot.lane.b32.xlu0 %v148, 14
    %v184 = vpop.permute.xlu0 %183
    %v187 = vsel %vm44, %v176, %v182
    %v188 = vsel %vm44, %v178, %v184
    %v189 = vpack.c.bf16 %v158, %v157
    %v190 = vpack.c.bf16 %v174, %v173
    %v191 = vpack.c.bf16 %v188, %v187
    %v192 = vld [vmem:[%s4] sm:$0xff]
    %v193 = vld [vmem:[%s4 + $0x8] sm:$0xff]
    %195 = vset.pattern.permute.xlu0 0
    %196 = vperm.xlu0 %195, %v192
    %v197 = vpop.permute.xlu0 %196
    %200 = vset.pattern.permute.xlu0 0
    %201 = vperm.xlu0 %200, %v193
    %v202 = vpop.permute.xlu0 %201
    %v206 = vunpack.c.l.b16 %v125
    %v207 = vunpack.c.l.b16 %v126
    %v208 = vpack.c.b16 %v207, %v206
    %vm209 = vcmask 392192
    %v211 = vsel %vm209, %v208, 0
    %213 = vmatpush.bf16.msra.mxu0 0
    %214 = vmatpush.bf16.msra.mxu0 0
    %215 = vmatpush.bf16.msra.mxu0 0
    %216 = vmatpush.bf16.msra.mxu0 0
    %217 = vmatpush.bf16.msra.mxu0 0
    %218 = vmatpush.bf16.msra.mxu0 %v191
    %219 = vmatpush.bf16.msra.mxu0 %v190
    %220 = vmatpush.bf16.msra.mxu0 %v189
    %221 = vmatmul.bf16.gmra.mxu0 %v211
    %v222 = vpop.f32.mrf.mxu0
    %v223 = vadd.f32 %v197, %v222
    %v224 = vpop.f32.mrf.mxu0
    %v225 = vadd.f32 %v202, %v224
    %226 = vdwg.mxu0
    %v227 = vmax.f32 %v223, 0.0
    %v228 = vmax.f32 %v225, 0.0
    %v229 = vadd.f32 %v227, %v119
    %v230 = vadd.f32 %v228, %v121
    %v231 = vmax.f32 %v229, 0.0
    %v232 = vmax.f32 %v230, 0.0
    %233 = vst.msk [vmem:[#allocation2] sm:$0xff] %vm97, %v231
    %234 = vst.msk [vmem:[#allocation2 + $0x8] sm:$0xff] %vm97, %v232
    // Predicated region
    $region22: #{tpu_custom_call.1} parent=1 // pred_check
      _
    $region23: #{tpu_custom_call.1} parent=1 // pred_check_branch
      %236 = sbr.rel (0) target = $region25
    $region24: #{tpu_custom_call.1} parent=1 // pred_region
      %238 = vsyncadd [#allocation3], 0
      %s239 = sshll.u32 [#allocation2], 4
      %s240 = int_to_ptr.vmem [resolvable:$true] %s239
      %s241 = sshll.u32 %s5, 4
      %s242 = int_to_ptr.hbm [resolvable:$true] %s241
      %247 = dma.vmem_to_hbm [thread:$0]  %s240, 256, %s242, [#allocation3], 128, 128, 8
    $region25: #{tpu_custom_call.1} parent=1 // pred_fallthru
      _
    // Predicated region
    $region26: #{tpu_custom_call.1} parent=1 // pred_check
      _
    $region27: #{tpu_custom_call.1} parent=1 // pred_check_branch
      %249 = sbr.rel (0) target = $region29
    $region28: #{tpu_custom_call.1} parent=1 // pred_region
      %251 = dma.done [#allocation3], 256
    $region29: #{tpu_custom_call.1} parent=1 // pred_fallthru
      _
    %252 = vsyncpa [#allocation3], 1

</llo_original>
